<compile_context>
chip_gen: v7x
topology: tpu7x:2x2x1
jax: 0.10.0
libtpu: 0.0.40
codegen_flags: <defaults>
</compile_context>

<pallas_src>
import functools
import math

import jax
import jax.numpy as jnp
from jax.experimental import pallas as pl
from jax.experimental.pallas import tpu as pltpu


# bf16 operands roughly double MXU throughput on v6e/v7x and halve HBM /
# VMEM bytes; accumulation stays f32. Elementwise epilogues (softmax, LN,
# tanh) are computed in f32 (v5e has no bf16 VPU/EUP).
MATMUL_DTYPE = jnp.bfloat16
ACT_DTYPE = MATMUL_DTYPE          # dtype of intermediate activations in HBM

# Tile targets: bf16 double-buffered footprint ~9 MiB, safe for v7x's 64 MiB
# physical VMEM and v5e's 16 MiB scoped default (raised explicitly below).
_TM, _TN, _TK = 512, 1024, 512
_TQ = 128                          # attention query-row tile target
_VMEM_LIMIT = 64 * 1024 * 1024


def _round_up(x, m):
    return ((x + m - 1) // m) * m


def _pick_tile(dim, target, granule):
    """Largest tile <= target that evenly divides `dim`, preferring multiples
    of `granule` (8 for sublane axes, 128 for lane axes). Falls back to the
    full dim (single block) when no aligned divisor exists."""
    if dim <= target:
        return dim
    t = (target // granule) * granule
    while t >= granule:
        if dim % t == 0:
            return t
        t -= granule
    return dim


# ----------------------------- Pallas kernels ------------------------------

def _linear_kernel(x_ref, w_ref, b_ref, o_ref, *scratch, activation):
    """out = act(x @ w + b), tiled over (M, N, K) with K-accumulation.

    When the output dtype is f32 there is no scratch ref: accumulation runs
    directly in the VMEM-resident output block (its block index ignores k).
    """
    acc_ref = scratch[0] if scratch else o_ref
    k = pl.program_id(2)

    @pl.when(k == 0)
    def _():
        acc_ref[...] = jnp.zeros_like(acc_ref)

    acc_ref[...] += jnp.dot(
        x_ref[...].astype(MATMUL_DTYPE),
        w_ref[...].astype(MATMUL_DTYPE),
        preferred_element_type=jnp.float32)

    @pl.when(k == pl.num_programs(2) - 1)
    def _():
        z = acc_ref[...] + b_ref[...]
        if activation == "relu":
            z = jnp.maximum(z, 0.0)
        elif activation == "tanh":
            z = jnp.tanh(z)
        o_ref[...] = z.astype(o_ref.dtype)


def pallas_linear(x, w, b, activation=None, out_dtype=None):
    out_dtype = ACT_DTYPE if out_dtype is None else out_dtype
    M, K = x.shape
    N = w.shape[1]
    tm = _pick_tile(M, _TM, 8)
    tn = _pick_tile(N, _TN, 128)
    tk = _pick_tile(K, _TK, 128)
    grid = (M // tm, N // tn, K // tk)
    use_scratch = jnp.dtype(out_dtype) != jnp.dtype(jnp.float32)
    scratch_shapes = [pltpu.VMEM((tm, tn), jnp.float32)] if use_scratch else []
    return pl.pallas_call(
        functools.partial(_linear_kernel, activation=activation),
        out_shape=jax.ShapeDtypeStruct((M, N), out_dtype),
        grid=grid,
        in_specs=[
            pl.BlockSpec((tm, tk), lambda i, j, k: (i, k)),
            pl.BlockSpec((tk, tn), lambda i, j, k: (k, j)),
            pl.BlockSpec((1, tn), lambda i, j, k: (0, j)),
        ],
        out_specs=pl.BlockSpec((tm, tn), lambda i, j, k: (i, j)),
        scratch_shapes=scratch_shapes,
        compiler_params=pltpu.CompilerParams(
            dimension_semantics=("parallel", "parallel", "arbitrary"),
            vmem_limit_bytes=_VMEM_LIMIT),
    )(x, w, b.reshape(1, N))


def _linear_norm_kernel(*refs, activation, has_residual, has_scratch, eps):
    """out = LayerNorm(act(x @ w + b) [+ residual]), K-tiled accumulation.

    Fuses: (attention output proj | FFN w2) + AddNorm, and the MLM head's
    Linear + ReLU + LayerNorm -- avoiding the HBM round trip of a separate
    layernorm kernel.
    """
    x_ref, w_ref, b_ref = refs[0], refs[1], refs[2]
    pos = 3
    res_ref = None
    if has_residual:
        res_ref = refs[pos]
        pos += 1
    g_ref, beta_ref, o_ref = refs[pos], refs[pos + 1], refs[pos + 2]
    acc_ref = refs[pos + 3] if has_scratch else o_ref

    k = pl.program_id(1)

    @pl.when(k == 0)
    def _():
        acc_ref[...] = jnp.zeros_like(acc_ref)

    acc_ref[...] += jnp.dot(
        x_ref[...].astype(MATMUL_DTYPE),
        w_ref[...].astype(MATMUL_DTYPE),
        preferred_element_type=jnp.float32)

    @pl.when(k == pl.num_programs(1) - 1)
    def _():
        z = acc_ref[...] + b_ref[...]
        if activation == "relu":
            z = jnp.maximum(z, 0.0)
        if res_ref is not None:
            z = z + res_ref[...].astype(jnp.float32)
        mu = jnp.mean(z, axis=-1, keepdims=True)
        zc = z - mu
        var = jnp.mean(zc * zc, axis=-1, keepdims=True)
        y = zc * jax.lax.rsqrt(var + eps)
        o_ref[...] = (y * g_ref[...] + beta_ref[...]).astype(o_ref.dtype)


def pallas_linear_norm(x, w, b, gamma, beta, residual=None, activation=None,
                       eps=1e-5, out_dtype=None):
    out_dtype = ACT_DTYPE if out_dtype is None else out_dtype
    M, K = x.shape
    N = w.shape[1]          # layernorm needs the full feature dim per row
    tm = _pick_tile(M, _TM, 8)
    tk = _pick_tile(K, _TK, 128)
    grid = (M // tm, K // tk)
    use_scratch = jnp.dtype(out_dtype) != jnp.dtype(jnp.float32)

    in_specs = [
        pl.BlockSpec((tm, tk), lambda i, k: (i, k)),
        pl.BlockSpec((tk, N), lambda i, k: (k, 0)),
        pl.BlockSpec((1, N), lambda i, k: (0, 0)),
    ]
    args = [x, w, b.reshape(1, N)]
    if residual is not None:
        in_specs.append(pl.BlockSpec((tm, N), lambda i, k: (i, 0)))
        args.append(residual)
    in_specs += [
        pl.BlockSpec((1, N), lambda i, k: (0, 0)),
        pl.BlockSpec((1, N), lambda i, k: (0, 0)),
    ]
    args += [gamma.reshape(1, N), beta.reshape(1, N)]
    scratch_shapes = [pltpu.VMEM((tm, N), jnp.float32)] if use_scratch else []

    return pl.pallas_call(
        functools.partial(_linear_norm_kernel, activation=activation,
                          has_residual=residual is not None,
                          has_scratch=use_scratch, eps=eps),
        out_shape=jax.ShapeDtypeStruct((M, N), out_dtype),
        grid=grid,
        in_specs=in_specs,
        out_specs=pl.BlockSpec((tm, N), lambda i, k: (i, 0)),
        scratch_shapes=scratch_shapes,
        compiler_params=pltpu.CompilerParams(
            dimension_semantics=("parallel", "arbitrary"),
            vmem_limit_bytes=_VMEM_LIMIT),
    )(*args)


def _attention_kernel(lens_ref, q_ref, kv_ref, o_ref, *, num_heads, head_dim,
                      scale):
    """One (batch, query-tile) block of multi-head self-attention.

    q_ref block:  (1, Tq, D)  -- Q columns, lane-dense.
    kv_ref block: (1, S, 2D)  -- [K | V] columns contiguous, resident per b.
    The key-padding mask is a (1, S) iota comparison against the
    scalar-prefetched valid_lens (no (S,S) / (B*H,S,S) mask in HBM).  Heads
    are processed with static lane slices at h*Dh offsets and merged by
    writing their columns of the lane-dense (Tq, D) output block.
    """
    b = pl.program_id(0)
    S = kv_ref.shape[1]
    D = num_heads * head_dim
    valid = lens_ref[b]
    key_idx = jax.lax.broadcasted_iota(jnp.int32, (1, S), 1)
    kmask = key_idx < valid                             # (1, S), hoisted

    # TODO(synk): a lax.fori_loop over heads (or head-pair processing) would
    # bound vreg live ranges better at H=12; kept a static loop with static
    # lane slices for robust Mosaic lowering.
    for h in range(num_heads):
        lo = h * head_dim
        hi = lo + head_dim
        # scale folded into q: O(Tq*Dh) multiplies instead of O(Tq*S)
        q = q_ref[0, :, lo:hi] * scale                             # (Tq, Dh)
        k = kv_ref[0, :, lo:hi]                                    # (S, Dh)
        v = kv_ref[0, :, D + lo:D + hi]                            # (S, Dh)
        s = jax.lax.dot_general(q, k, (((1,), (1,)), ((), ())),
                                preferred_element_type=jnp.float32)  # (Tq, S)
        s = jnp.where(kmask, s, -1e9)
        s = s - jnp.max(s, axis=-1, keepdims=True)
        p = jnp.exp(s)
        p = p * pl.reciprocal(jnp.sum(p, axis=-1, keepdims=True), approx=True)
        out = jnp.dot(p.astype(MATMUL_DTYPE), v,
                      preferred_element_type=jnp.float32)            # (Tq, Dh)
        o_ref[0, :, lo:hi] = out.astype(o_ref.dtype)


def pallas_attention(q, kv, valid_lens, num_heads):
    # q: (B, S, D), kv: (B, S, 2D) with [K | V] contiguous; returns (B, S, D).
    B, S, D = q.shape
    Dh = D // num_heads
    Tq = _pick_tile(S, _TQ, 8)
    scale = 1.0 / math.sqrt(Dh)
    grid_spec = pltpu.PrefetchScalarGridSpec(
        num_scalar_prefetch=1,
        grid=(B, S // Tq),
        in_specs=[
            pl.BlockSpec((1, Tq, D), lambda b, qi, lens: (b, qi, 0)),
            pl.BlockSpec((1, S, 2 * D), lambda b, qi, lens: (b, 0, 0)),
        ],
        out_specs=pl.BlockSpec((1, Tq, D), lambda b, qi, lens: (b, qi, 0)),
    )
    return pl.pallas_call(
        functools.partial(_attention_kernel, num_heads=num_heads,
                          head_dim=Dh, scale=scale),
        out_shape=jax.ShapeDtypeStruct((B, S, D), ACT_DTYPE),
        grid_spec=grid_spec,
        compiler_params=pltpu.CompilerParams(
            dimension_semantics=("parallel", "parallel")),
    )(valid_lens.astype(jnp.int32), q, kv)


# --------------------------- parameters & forward ---------------------------

def init_bert_params(key, vocab_size, embed_dim, num_heads, ffn_hiddens,
                     num_layers, max_len):
    keys = iter(jax.random.split(key, 16 + 8 * num_layers))

    def nrm(shape, scale=0.02, dtype=MATMUL_DTYPE):
        return (scale * jax.random.normal(next(keys), shape)).astype(dtype)

    def zeros(n):
        return jnp.zeros((n,), jnp.float32)

    def ones(n):
        return jnp.ones((n,), jnp.float32)

    # Pad the vocab projection's output-feature dim to a multiple of 128 so
    # the weight tiles stay lane-dense (real BERT vocab 30522 has no
    # 128-aligned divisor and would otherwise force a full-N weight block).
    vocab_pad = _round_up(vocab_size, 128)

    params = {
        "tok_emb": nrm((vocab_size, embed_dim), dtype=ACT_DTYPE),
        "seg_emb": nrm((2, embed_dim), dtype=ACT_DTYPE),
        "pos_emb": nrm((1, max_len, embed_dim), dtype=ACT_DTYPE),
        "layers": [],
        "mlm": {
            "w1": nrm((embed_dim, embed_dim)), "b1": zeros(embed_dim),
            "ln_g": ones(embed_dim), "ln_b": zeros(embed_dim),
            # padded columns beyond vocab_size are sliced away after the kernel
            "w2": nrm((embed_dim, vocab_pad)), "b2": zeros(vocab_pad),
            "vocab_size": vocab_size,
        },
        "nsp": {
            "w1": nrm((embed_dim, embed_dim)), "b1": zeros(embed_dim),
            "w2": nrm((embed_dim, 2)), "b2": zeros(2),
        },
    }
    for _ in range(num_layers):
        wq = nrm((embed_dim, embed_dim))
        wk = nrm((embed_dim, embed_dim))
        wv = nrm((embed_dim, embed_dim))
        params["layers"].append({
            "w_q": wq, "b_q": zeros(embed_dim),
            "w_kv": jnp.concatenate([wk, wv], axis=1),     # [K | V] contiguous
            "b_kv": zeros(2 * embed_dim),
            "wo": nrm((embed_dim, embed_dim)), "bo": zeros(embed_dim),
            "ln1_g": ones(embed_dim), "ln1_b": zeros(embed_dim),
            "ffn_w1": nrm((embed_dim, ffn_hiddens)), "ffn_b1": zeros(ffn_hiddens),
            "ffn_w2": nrm((ffn_hiddens, embed_dim)), "ffn_b2": zeros(embed_dim),
            "ln2_g": ones(embed_dim), "ln2_b": zeros(embed_dim),
        })
    return params


def bert_forward(params, tokens, segments, valid_lens, pred_positions, num_heads):
    B, S = tokens.shape
    D = params["tok_emb"].shape[1]
    H = num_heads
    num_layers = len(params["layers"])

    # --- BertEncoder: embeddings (gather glue in plain JAX) ---
    X = (params["tok_emb"][tokens] + params["seg_emb"][segments]
         + params["pos_emb"][:, :S, :]).astype(ACT_DTYPE)          # (B, S, D)
    # TODO(synk): dropout omitted (eval/inference semantics; identity at test time).

    Xf = X.reshape(B * S, D)
    for li, lp in enumerate(params["layers"]):
        q = pallas_linear(Xf, lp["w_q"], lp["b_q"])                # (B*S, D)
        kv = pallas_linear(Xf, lp["w_kv"], lp["b_kv"])             # (B*S, 2D)
        attn = pallas_attention(q.reshape(B, S, D),
                                kv.reshape(B, S, 2 * D), valid_lens, H)
        attn2d = attn.reshape(B * S, D)
        # fused: output projection + bias + residual + LayerNorm
        Y = pallas_linear_norm(attn2d, lp["wo"], lp["bo"],
                               lp["ln1_g"], lp["ln1_b"], residual=Xf)
        f = pallas_linear(Y, lp["ffn_w1"], lp["ffn_b1"], activation="relu")
        # fused: FFN w2 + bias + residual + LayerNorm (f32 out on last layer)
        last = li == num_layers - 1
        Xf = pallas_linear_norm(f, lp["ffn_w2"], lp["ffn_b2"],
                                lp["ln2_g"], lp["ln2_b"], residual=Y,
                                out_dtype=jnp.float32 if last else ACT_DTYPE)
    encoder_out = Xf.reshape(B, S, D)                              # f32

    # --- MaskLM head: gather predicted positions, then fused MLP ---
    mlm_Y_hat = None
    if pred_positions is not None:
        num_pred = pred_positions.shape[1]
        pp = pred_positions.reshape(-1)
        batch_idx = jnp.repeat(jnp.arange(B), num_pred)
        masked_X = encoder_out[batch_idx, pp]                      # (B*num_pred, D)
        h = pallas_linear_norm(masked_X, params["mlm"]["w1"], params["mlm"]["b1"],
                               params["mlm"]["ln_g"], params["mlm"]["ln_b"],
                               activation="relu")
        logits = pallas_linear(h, params["mlm"]["w2"], params["mlm"]["b2"],
                               out_dtype=jnp.float32)              # (rows, vocab_pad)
        vocab = params["mlm"]["vocab_size"]
        mlm_Y_hat = logits[:, :vocab].reshape(B, num_pred, vocab)

    # --- NextSentencePred head on the <cls> token ---
    cls = encoder_out[:, 0, :]                                     # (B, D)
    h = pallas_linear(cls, params["nsp"]["w1"], params["nsp"]["b1"],
                      activation="tanh")
    nsp_Y_hat = pallas_linear(h, params["nsp"]["w2"], params["nsp"]["b2"],
                              out_dtype=jnp.float32)

    return encoder_out, mlm_Y_hat, nsp_Y_hat


# --------------------------------- main -------------------------------------

if __name__ == "__main__":
    VOCAB, D, H, FFN, L, MAXLEN = 50, 32, 4, 64, 2, 16
    B, S, NPRED = 2, 8, 3

    key = jax.random.PRNGKey(0)
    kp, kt = jax.random.split(key, 2)
    params = init_bert_params(kp, VOCAB, D, H, FFN, L, MAXLEN)

    tokens = jax.random.randint(kt, (B, S), 0, VOCAB, dtype=jnp.int32)
    segments = jnp.concatenate(
        [jnp.zeros((B, S // 2), jnp.int32), jnp.ones((B, S // 2), jnp.int32)],
        axis=1)
    valid_lens = jnp.array([8, 5], dtype=jnp.int32)
    pred_positions = jnp.array([[1, 3, 5], [0, 2, 4]], dtype=jnp.int32)

    enc, mlm, nsp = bert_forward(params, tokens, segments, valid_lens,
                                 pred_positions, num_heads=H)
    jax.block_until_ready((enc, mlm, nsp))

    assert enc.shape == (B, S, D) and enc.dtype == jnp.float32
    assert mlm.shape == (B, NPRED, VOCAB) and mlm.dtype == jnp.float32
    assert nsp.shape == (B, 2) and nsp.dtype == jnp.float32
    print("KERNEL_OK")
</pallas_src>

<mosaic_0001>
module attributes {stable_mosaic.version = 11 : i64} {
  func.func @_linear_kernel(%arg0: i32, %arg1: i32, %arg2: i32, %arg3: memref<16x32xbf16, #tpu.memory_space<vmem>>, %arg4: memref<32x32xbf16, #tpu.memory_space<vmem>>, %arg5: memref<1x32xf32, #tpu.memory_space<vmem>>, %arg6: memref<16x32xbf16, #tpu.memory_space<vmem>>, %arg7: memref<16x32xf32, #tpu.memory_space<vmem>>) attributes {dimension_semantics = [#tpu.dimension_semantics<parallel>, #tpu.dimension_semantics<parallel>, #tpu.dimension_semantics<arbitrary>], iteration_bounds = array<i64: 1, 1, 1>, scalar_prefetch = 0 : i64, scratch_operands = 1 : i64, tpu.core_type = #tpu.core_type<tc>, window_params = [{transform_indices = @transform_0, window_bounds = array<i64: 16, 32>}, {transform_indices = @transform_1, window_bounds = array<i64: 32, 32>}, {transform_indices = @transform_2, window_bounds = array<i64: 1, 32>}, {transform_indices = @transform_3, window_bounds = array<i64: 16, 32>}]} {
    %c0_i32 = arith.constant 0 : i32
    %0 = arith.cmpi eq, %arg2, %c0_i32 : i32
    %1 = arith.extui %0 : i1 to i32
    %c0_i32_0 = arith.constant 0 : i32
    %2 = arith.cmpi ne, %1, %c0_i32_0 : i32
    scf.if %2 {
      %cst_10 = arith.constant 0.000000e+00 : f32
      %12 = vector.broadcast %cst_10 : f32 to vector<16x32xf32>
      %c0_11 = arith.constant 0 : index
      %c0_12 = arith.constant 0 : index
      %13 = vector.load %arg7[%c0_11, %c0_12] : memref<16x32xf32, #tpu.memory_space<vmem>>, vector<16x32xf32>
      tpu.vector_store %arg7[%c0_11, %c0_12], %12 {strides = array<i32>} : memref<16x32xf32, #tpu.memory_space<vmem>>, vector<16x32xf32>,
    } else {
    }
    %c0 = arith.constant 0 : index
    %c0_1 = arith.constant 0 : index
    %3 = vector.load %arg7[%c0, %c0_1] : memref<16x32xf32, #tpu.memory_space<vmem>>, vector<16x32xf32>
    %c0_2 = arith.constant 0 : index
    %c0_3 = arith.constant 0 : index
    %4 = vector.load %arg3[%c0_2, %c0_3] : memref<16x32xbf16, #tpu.memory_space<vmem>>, vector<16x32xbf16>
    %c0_4 = arith.constant 0 : index
    %c0_5 = arith.constant 0 : index
    %5 = vector.load %arg4[%c0_4, %c0_5] : memref<32x32xbf16, #tpu.memory_space<vmem>>, vector<32x32xbf16>
    %cst = arith.constant dense<0.000000e+00> : vector<16x32xf32>
    %6 = tpu.matmul %4, %5, %cst {dimension_numbers = #tpu.dot_dimension_numbers<[1], [0], [0], [1], [0, 0, 1, 1], [], []>} : vector<16x32xbf16>, vector<32x32xbf16>, vector<16x32xf32> -> vector<16x32xf32>
    %7 = arith.addf %3, %6 : vector<16x32xf32>
    %c0_6 = arith.constant 0 : index
    %c0_7 = arith.constant 0 : index
    %8 = vector.load %arg7[%c0_6, %c0_7] : memref<16x32xf32, #tpu.memory_space<vmem>>, vector<16x32xf32>
    tpu.vector_store %arg7[%c0_6, %c0_7], %7 {strides = array<i32>} : memref<16x32xf32, #tpu.memory_space<vmem>>, vector<16x32xf32>,
    %c0_i32_8 = arith.constant 0 : i32
    %9 = arith.cmpi eq, %arg2, %c0_i32_8 : i32
    %10 = arith.extui %9 : i1 to i32
    %c0_i32_9 = arith.constant 0 : i32
    %11 = arith.cmpi ne, %10, %c0_i32_9 : i32
    scf.if %11 {
      %c0_10 = arith.constant 0 : index
      %c0_11 = arith.constant 0 : index
      %12 = vector.load %arg7[%c0_10, %c0_11] : memref<16x32xf32, #tpu.memory_space<vmem>>, vector<16x32xf32>
      %c0_12 = arith.constant 0 : index
      %c0_13 = arith.constant 0 : index
      %13 = vector.load %arg5[%c0_12, %c0_13] : memref<1x32xf32, #tpu.memory_space<vmem>>, vector<1x32xf32>
      %14 = vector.broadcast %13 : vector<1x32xf32> to vector<16x32xf32>
      %15 = arith.addf %12, %14 : vector<16x32xf32>
      %16 = arith.truncf %15 : vector<16x32xf32> to vector<16x32xbf16>
      %c0_14 = arith.constant 0 : index
      %c0_15 = arith.constant 0 : index
      %17 = vector.load %arg6[%c0_14, %c0_15] : memref<16x32xbf16, #tpu.memory_space<vmem>>, vector<16x32xbf16>
      tpu.vector_store %arg6[%c0_14, %c0_15], %16 {strides = array<i32>} : memref<16x32xbf16, #tpu.memory_space<vmem>>, vector<16x32xbf16>,
    } else {
    }
    return
  }
  func.func @transform_0(%arg0: i32, %arg1: i32, %arg2: i32) -> (i32, i32) {
    %c0_i32 = arith.constant 0 : i32
    return %arg0, %arg2 : i32, i32
  }
  func.func @transform_1(%arg0: i32, %arg1: i32, %arg2: i32) -> (i32, i32) {
    %c0_i32 = arith.constant 0 : i32
    return %arg2, %arg1 : i32, i32
  }
  func.func @transform_2(%arg0: i32, %arg1: i32, %arg2: i32) -> (i32, i32) {
    %c0_i32 = arith.constant 0 : i32
    %c0_i32_0 = arith.constant 0 : i32
    return %c0_i32, %arg1 : i32, i32
  }
  func.func @transform_3(%arg0: i32, %arg1: i32, %arg2: i32) -> (i32, i32) {
    %c0_i32 = arith.constant 0 : i32
    return %arg0, %arg1 : i32, i32
  }
}

</mosaic_0001>

<llo_original>
// kernel: tpu_custom_call.1
$region0: #{tpu_custom_call.1}
  #allocation0 [shape = 'u32[]', space=smem, size = 0x4, offset = 0x4, fixed_abs, tag = 'smem constant byte address 0x4 - core index']
  #allocation1 [shape = 'u32[144,128]{1,0:T(1,128)}', space=vmem, size = 0x12000, scoped, tag = 'internal scratch']
  #allocation2 [shape = 'f32[16,32]{1,0:T(8,128)}', space=vmem, size = 0x2000, scoped, tag = 'scratch operand']
  %s0 = inlined_call_operand.hbm [shape: bf16[16,32], index: 0, kind: input, shape index: {}]
  %s1 = inlined_call_operand.hbm [shape: bf16[32,32], index: 1, kind: input, shape index: {}]
  %s2 = inlined_call_operand.hbm [shape: f32[1,32], index: 2, kind: input, shape index: {}]
  %s3 = inlined_call_operand.hbm [shape: bf16[16,32], index: 3, kind: output, shape index: {}]
  %s4 = sld [smem:[#allocation0]]
  $region42: #{tpu_custom_call.1} parent=0
    _
  %s6 = ssub.s32 1, %s4
  %s7 = scalar_select 0, %s6, %s4
  $region1: #{tpu_custom_call.1} parent=0
    #allocation3 [shape = 'u8[4096]{0}', space=vmem, size = 0x1000, scoped, tag = 'input window, operand 0, single buffered']
    #allocation4 [shape = 's32[1]{0}', space=sflag, size = 0x4, scoped, tag = 'scoped memory for tpu_custom_call.1']
    #allocation5 [shape = 's32[1]{0}', space=sflag, size = 0x4, scoped, tag = 'scoped memory for tpu_custom_call.1']
    #allocation6 [shape = 'u8[8192]{0}', space=vmem, size = 0x2000, scoped, tag = 'input window, operand 1, single buffered']
    #allocation7 [shape = 's32[1]{0}', space=sflag, size = 0x4, scoped, tag = 'scoped memory for tpu_custom_call.1']
    #allocation8 [shape = 'u8[512]{0}', space=vmem, size = 0x400, scoped, tag = 'input window, operand 2, single buffered']
    #allocation9 [shape = 'u8[4096]{0}', space=vmem, size = 0x1000, scoped, tag = 'output window, operand 0, single buffered']
    %8 = vsyncpa [#allocation4], 0
    %9 = vsyncpa [#allocation7], 0
    %10 = vsyncpa [#allocation5], 0
    // Predicated region
    $region2: #{tpu_custom_call.1} parent=1 // pred_check
      _
    $region3: #{tpu_custom_call.1} parent=1 // pred_check_branch
      %12 = sbr.rel (0) target = $region5
    $region4: #{tpu_custom_call.1} parent=1 // pred_region
      %s14 = ssub.s32 128, 128
      %15 = vsyncadd [#allocation4], %s14
      %s16 = sshll.u32 [#allocation3], 4
      %s17 = int_to_ptr.vmem [resolvable:$true] %s16
      %22 = dma.hbm_to_vmem [thread:$0]  %s0, 128, %s17, [#allocation4], 64, 64, 4
    $region5: #{tpu_custom_call.1} parent=1 // pred_fallthru
      _
    // Predicated region
    $region6: #{tpu_custom_call.1} parent=1 // pred_check
      _
    $region7: #{tpu_custom_call.1} parent=1 // pred_check_branch
      %24 = sbr.rel (0) target = $region9
    $region8: #{tpu_custom_call.1} parent=1 // pred_region
      %s26 = ssub.s32 256, 256
      %27 = vsyncadd [#allocation7], %s26
      %s28 = sshll.u32 [#allocation6], 4
      %s29 = int_to_ptr.vmem [resolvable:$true] %s28
      %34 = dma.hbm_to_vmem [thread:$0]  %s1, 256, %s29, [#allocation7], 64, 64, 4
    $region9: #{tpu_custom_call.1} parent=1 // pred_fallthru
      _
    // Predicated region
    $region10: #{tpu_custom_call.1} parent=1 // pred_check
      _
    $region11: #{tpu_custom_call.1} parent=1 // pred_check_branch
      %36 = sbr.rel (0) target = $region13
    $region12: #{tpu_custom_call.1} parent=1 // pred_region
      %s38 = ssub.s32 16, 16
      %39 = vsyncadd [#allocation7], %s38
      %s41 = sshll.u32 [#allocation8], 4
      %s42 = int_to_ptr.vmem [resolvable:$true] %s41
      %44 = dma.hbm_to_vmem [thread:$0]  %s2, 16, %s42, [#allocation7]
    $region13: #{tpu_custom_call.1} parent=1 // pred_fallthru
      _
    // Predicated region
    $region14: #{tpu_custom_call.1} parent=1 // pred_check
      _
    $region15: #{tpu_custom_call.1} parent=1 // pred_check_branch
      %46 = sbr.rel (0) target = $region17
    $region16: #{tpu_custom_call.1} parent=1 // pred_region
      %47 = dma.done [#allocation4], 128
    $region17: #{tpu_custom_call.1} parent=1 // pred_fallthru
      _
    // Predicated region
    $region18: #{tpu_custom_call.1} parent=1 // pred_check
      _
    $region19: #{tpu_custom_call.1} parent=1 // pred_check_branch
      %49 = sbr.rel (0) target = $region21
    $region20: #{tpu_custom_call.1} parent=1 // pred_region
      %50 = dma.done [#allocation7], 256
    $region21: #{tpu_custom_call.1} parent=1 // pred_fallthru
      _
    // Predicated region
    $region22: #{tpu_custom_call.1} parent=1 // pred_check
      _
    $region23: #{tpu_custom_call.1} parent=1 // pred_check_branch
      %52 = sbr.rel (0) target = $region25
    $region24: #{tpu_custom_call.1} parent=1 // pred_region
      %53 = dma.done [#allocation7], 16
    $region25: #{tpu_custom_call.1} parent=1 // pred_fallthru
      _
    %p55 = scmp.eq.s32.totalorder 0, 0
    // Predicated region
    $region26: #{tpu_custom_call.1} parent=1 // pred_check
      %p56 = pneg %p55
    $region27: #{tpu_custom_call.1} parent=1 // pred_check_branch
      %58 = sbr.rel (%p56) target = $region29
    $region28: #{tpu_custom_call.1} parent=1 // pred_region
      %vm59 = vcmask 261120
      %60 = vst.msk [vmem:[#allocation2] sm:$0xff] %vm59, 0.0
      %61 = vst.msk [vmem:[#allocation2 + $0x8] sm:$0xff] %vm59, 0.0
    $region29: #{tpu_custom_call.1} parent=1 // pred_fallthru
      _
    %v62 = vld [vmem:[#allocation2] sm:$0xff]
    %v63 = vld [vmem:[#allocation2 + $0x8] sm:$0xff]
    %v64 = vld [vmem:[#allocation3] sm:$0xf]
    %v65 = vld [vmem:[#allocation3 + $0x4] sm:$0xf]
    %v66 = vld [vmem:[#allocation6] sm:$0xf]
    %v67 = vld [vmem:[#allocation6 + $0x4] sm:$0xf]
    %v68 = vld [vmem:[#allocation6 + $0x8] sm:$0xf]
    %v69 = vld [vmem:[#allocation6 + $0xc] sm:$0xf]
    %v72 = vunpack.c.l.b16 %v64
    %v73 = vunpack.c.l.b16 %v65
    %v74 = vpack.c.b16 %v73, %v72
    %v79 = vunpack.c.l.b16 %v66
    %v80 = vunpack.c.l.b16 %v67
    %v81 = vunpack.c.l.b16 %v68
    %v82 = vunpack.c.l.b16 %v69
    %v83 = vpack.c.b16 %v80, %v79
    %v84 = vpack.c.b16 %v82, %v81
    %vm87 = vcmask 261120
    %v89 = vsel %vm87, %v74, 0
    %91 = vmatprep.subr.bf16.mxu0 0
    %92 = vmatpush1.bf16.msra.mxu0 %v83
    %93 = vmatprep.subr.bf16.mxu0 0
    %94 = vmatpush1.bf16.msra.mxu0 %v84
    %95 = vmatprep.subr.bf16.mxu0 0
    %96 = vmatpush1.bf16.msra.mxu0 0
    %97 = vmatprep.subr.bf16.mxu0 0
    %98 = vmatpush1.bf16.msra.mxu0 0
    %99 = vmatprep.subr.bf16.mxu0 0
    %100 = vmatpush1.bf16.msra.mxu0 0
    %101 = vmatprep.subr.bf16.mxu0 0
    %102 = vmatpush1.bf16.msra.mxu0 0
    %103 = vmatprep.subr.bf16.mxu0 0
    %104 = vmatpush1.bf16.msra.mxu0 0
    %105 = vmatprep.subr.bf16.mxu0 0
    %106 = vmatpush1.bf16.msra.mxu0 0
    %107 = vmatprep.subr.bf16.mxu0 0
    %108 = vmatpush1.bf16.msra.mxu0 0
    %109 = vmatprep.subr.bf16.mxu0 0
    %110 = vmatpush1.bf16.msra.mxu0 0
    %111 = vmatprep.subr.bf16.mxu0 0
    %112 = vmatpush1.bf16.msra.mxu0 0
    %113 = vmatprep.subr.bf16.mxu0 0
    %114 = vmatpush1.bf16.msra.mxu0 0
    %115 = vmatprep.subr.bf16.mxu0 0
    %116 = vmatpush1.bf16.msra.mxu0 0
    %117 = vmatprep.subr.bf16.mxu0 0
    %118 = vmatpush1.bf16.msra.mxu0 0
    %119 = vmatprep.subr.bf16.mxu0 0
    %120 = vmatpush1.bf16.msra.mxu0 0
    %121 = vmatprep.subr.bf16.mxu0 0
    %122 = vmatpush1.bf16.msra.mxu0 0
    %123 = vmatprep.mubr.bf16.mxu0 0
    %124 = vmatmul.mubr.bf16.gmra.mrb[0].mxu0 %v89
    %v125 = vpop.f32.mrb[0].mxu0
    %v126 = vadd.f32 0.0, %v125
    %v127 = vpop.f32.mrb[0].mxu0
    %v128 = vpop.f32.mrb[0].mxu0
    %v129 = vadd.f32 0.0, %v128
    %v130 = vpop.f32.mrb[0].mxu0
    %131 = vdwg.mxu0
    %v132 = vadd.f32 %v62, %v126
    %v133 = vadd.f32 %v63, %v129
    %134 = vst.msk [vmem:[#allocation2] sm:$0xff] %vm87, %v132
    %135 = vst.msk [vmem:[#allocation2 + $0x8] sm:$0xff] %vm87, %v133
    // Predicated region
    $region30: #{tpu_custom_call.1} parent=1 // pred_check
      %p136 = pneg %p55
    $region31: #{tpu_custom_call.1} parent=1 // pred_check_branch
      %138 = sbr.rel (%p136) target = $region33
    $region32: #{tpu_custom_call.1} parent=1 // pred_region
      %v139 = vld [vmem:[#allocation2] sm:$0xff]
      %v140 = vld [vmem:[#allocation2 + $0x8] sm:$0xff]
      %v141 = vld [vmem:[#allocation8] sm:$0x1]
      %v143 = vlaneseq
      %v144 = vshrl.u32 %v143, 7
      %v145 = vsub.s32 0, %v144
      %v146 = vrot.slane %v141, %v145
      %v148 = vadd.f32 %v139, %v146
      %v149 = vadd.f32 %v140, %v146
      %v150 = vpack.c.bf16 %v149, %v148
      %v152 = vunpack.c.l.b16 %v150
      %v153 = vunpack.c.h.b16 %v150
      %v154 = vpack.c.b16 %v152, %v152
      %v155 = vpack.c.b16 %v153, %v153
      %vm158 = vcmask 257024
      %159 = vst.msk [vmem:[#allocation9] sm:$0xf] %vm158, %v154
      %160 = vst.msk [vmem:[#allocation9 + $0x4] sm:$0xf] %vm158, %v155
    $region33: #{tpu_custom_call.1} parent=1 // pred_fallthru
      _
    // Predicated region
    $region34: #{tpu_custom_call.1} parent=1 // pred_check
      _
    $region35: #{tpu_custom_call.1} parent=1 // pred_check_branch
      %162 = sbr.rel (0) target = $region37
    $region36: #{tpu_custom_call.1} parent=1 // pred_region
      %s164 = ssub.s32 128, 128
      %165 = vsyncadd [#allocation5], %s164
      %s166 = sshll.u32 [#allocation9], 4
      %s167 = int_to_ptr.vmem [resolvable:$true] %s166
      %172 = dma.vmem_to_hbm [thread:$0]  %s167, 128, %s3, [#allocation5], 64, 64, 4
    $region37: #{tpu_custom_call.1} parent=1 // pred_fallthru
      _
    // Predicated region
    $region38: #{tpu_custom_call.1} parent=1 // pred_check
      _
    $region39: #{tpu_custom_call.1} parent=1 // pred_check_branch
      %174 = sbr.rel (0) target = $region41
    $region40: #{tpu_custom_call.1} parent=1 // pred_region
      %175 = dma.done [#allocation5], 128
    $region41: #{tpu_custom_call.1} parent=1 // pred_fallthru
      _
    %176 = vsyncpa [#allocation4], 1
    %177 = vsyncpa [#allocation7], 1
    %178 = vsyncpa [#allocation5], 1

</llo_original>
